<compile_context>
chip_gen: v7x
topology: tpu7x:2x2x1
jax: 0.10.0
libtpu: 0.0.40
codegen_flags: <defaults>
</compile_context>

<pallas_src>
import functools
import math

import jax
import jax.numpy as jnp
from jax import lax
from jax.experimental import pallas as pl
from jax.experimental.pallas import tpu as pltpu

# TODO(synk): training-mode Dropout (pltpu.prng_seed/prng_random_bits mask +
# 1/(1-p) rescale) is intentionally omitted; eval-mode Dropout is identity.
# TODO(synk): int8 operands should be dequantized to bf16 before the dot on
# v7x (its MXU has no integer path); v5e/v6e may keep int8 on the MXU.

LN_EPS = 1e-5
_SQRT_HALF = 0.7071067811865476      # 1/sqrt(2)
_SQRT_2_OVER_PI = 0.7978845608028654  # sqrt(2/pi), tanh-approx GELU


def _round_up(x, m):
    return ((x + m - 1) // m) * m


def _sublane_multiple(dtype):
    # Minimum second-minor tile per dtype: 8 (f32), 16 (bf16), 32 (int8/fp8).
    return {4: 8, 2: 16, 1: 32}.get(jnp.dtype(dtype).itemsize, 8)


def _vmem_capacity_bytes():
    try:
        return int(pltpu.get_tpu_info().vmem_capacity_bytes)
    except Exception:
        return 64 << 20  # conservative (v7x-sized) fallback


def _tile_vmem_bytes(tm, tk_lane, n_pad, x_b, w_b, out_b, with_scratch):
    return (2 * tm * tk_lane * x_b          # x tiles (double-buffered)
            + 2 * tk_lane * n_pad * w_b     # weight slabs
            + 2 * 3 * n_pad * 4             # packed bias/gamma/beta
            + 2 * tm * n_pad * out_b        # output tiles
            + (tm * n_pad * 4 if with_scratch else 0))


def _choose_tiles(B, K_lane, N_pad, x_b, w_b, out_b, out_is_f32, sub, budget,
                  tm_hint=None):
    """Returns (tm, tk).  tk is None when a single K step (weight-resident)
    fits in the VMEM budget."""
    B_sub = _round_up(B, sub)
    # Cap tm so the batch axis has >= 2 tiles once B is big enough (lets the
    # "parallel" axis shard across v7x's 2 TensorCores).
    tm_cap = B_sub if B_sub < 512 else _round_up((B_sub + 1) // 2, sub)

    base = [1024, 768, 512, 384, 256, 192, 128, 96, 64, 32, 16, 8]
    raw = ([int(tm_hint)] if tm_hint else []) + base
    cands = []
    for t in raw:
        t = int(max(sub, min(_round_up(t, sub), tm_cap)))
        if t not in cands:
            cands.append(t)

    def need(tm, tk_lane, multi_k):
        scratch = multi_k and not out_is_f32
        return _tile_vmem_bytes(tm, tk_lane, N_pad, x_b, w_b, out_b, scratch)

    # Phase 1: weight fully VMEM-resident (single K step): the whole weight is
    # read from HBM exactly once for all batch tiles.
    for tm in cands:
        if need(tm, K_lane, multi_k=False) <= budget:
            return tm, None

    # Phase 2: tile the contraction dim.  Bigger tm first (fewer full-weight
    # re-streams), then the largest fitting K slab.
    tk_cands = [t for t in (4096, 2048, 1024, 512, 256, 128) if t < K_lane]
    for tm in cands:
        for tk in tk_cands:
            if need(tm, tk, multi_k=True) <= budget:
                return tm, tk

    return sub, 128  # last-resort floor


def _epilogue(acc, bgb_ref, o_ref, n_valid, activation, use_tanh_gelu):
    """bias add + (optional) LayerNorm + GELU, single masked pass."""
    n_pad = acc.shape[-1]
    bias = bgb_ref[0:1, :]
    y = acc + bias                                   # Linear (f32 epilogue)

    if not activation:
        o_ref[...] = y.astype(o_ref.dtype)
        return

    gamma = bgb_ref[1:2, :]
    beta = bgb_ref[2:3, :]

    # Mask padded lanes once; statistics use var = E[y^2] - mean^2 so only a
    # single masked copy of y is needed.
    if n_valid != n_pad:
        col = lax.broadcasted_iota(jnp.int32, y.shape, 1)
        y = jnp.where(col < n_valid, y, 0.0)
    inv_n = jnp.float32(1.0 / n_valid)
    mean = jnp.sum(y, axis=-1, keepdims=True) * inv_n
    var = jnp.sum(y * y, axis=-1, keepdims=True) * inv_n - mean * mean
    y_hat = (y - mean) * lax.rsqrt(var + jnp.float32(LN_EPS)) * gamma + beta

    if use_tanh_gelu:
        # torch.nn.GELU(approximate='tanh'); EUP tanh.
        inner = jnp.float32(_SQRT_2_OVER_PI) * (y_hat + 0.044715 * y_hat * y_hat * y_hat)
        out = 0.5 * y_hat * (1.0 + jnp.tanh(inner))
    else:
        # Exact (erf) GELU, matching torch.nn.GELU() default.
        out = 0.5 * y_hat * (1.0 + lax.erf(y_hat * jnp.float32(_SQRT_HALF)))
    o_ref[...] = out.astype(o_ref.dtype)


def _linear_block_kernel(x_ref, w_ref, bgb_ref, o_ref, *scratch, n_valid,
                         activation, use_tanh_gelu, multi_k):
    # x_ref:   (tm, tk)        activation tile (native dtype)
    # w_ref:   (tk, N_pad)     weight slab, pre-transposed (native dtype)
    # bgb_ref: (3, N_pad) f32  packed [bias; gamma; beta]
    # o_ref:   (tm, N_pad)
    # scratch: optional (tm, N_pad) f32 accumulator (multi-K, narrow output)
    if not multi_k:
        acc = jnp.dot(x_ref[...], w_ref[...], preferred_element_type=jnp.float32)
        _epilogue(acc, bgb_ref, o_ref, n_valid, activation, use_tanh_gelu)
        return

    # f32 outputs accumulate directly into the resident output block (saves
    # tm*N_pad*4 bytes of VMEM -- matters on v7x's 64 MiB).
    acc_ref = scratch[0] if scratch else o_ref
    k = pl.program_id(1)

    @pl.when(k == 0)
    def _():
        acc_ref[...] = jnp.zeros_like(acc_ref)

    # MXU consumes operands in their native dtype; accumulate in f32.
    acc_ref[...] += jnp.dot(x_ref[...], w_ref[...],
                            preferred_element_type=jnp.float32)

    @pl.when(k == pl.num_programs(1) - 1)
    def _():
        _epilogue(acc_ref[...], bgb_ref, o_ref, n_valid, activation,
                  use_tanh_gelu)


def linear_block(x, weight=None, bias=None, gamma=None, beta=None, *,
                 activation=True, use_tanh_gelu=False, weight_kn=None, tm=None):
    """Dropout(eval) -> Linear -> [LayerNorm -> GELU].

    x:      [B, input_dim]
    weight: [output_dim, input_dim]   (torch.nn.Linear layout)
    weight_kn: optional pre-transposed [input_dim, output_dim] weight; pass
               this to skip the per-call transpose.
    bias/gamma/beta: [output_dim]
    """
    B, K = x.shape
    if weight_kn is None:
        # TODO(synk): in a real model store the weight pre-transposed (and
        # pre-padded) as [K, N] so this relayout disappears from the hot path.
        weight_kn = jnp.transpose(weight)           # [K, N]
    N = weight_kn.shape[1]
    out_dtype = x.dtype
    out_is_f32 = jnp.dtype(out_dtype) == jnp.dtype(jnp.float32)

    x_b = jnp.dtype(x.dtype).itemsize
    w_b = jnp.dtype(weight_kn.dtype).itemsize
    out_b = jnp.dtype(out_dtype).itemsize

    N_pad = _round_up(N, 128)
    K_lane = _round_up(K, 128)
    sub = _sublane_multiple(x.dtype)

    vmem_cap = _vmem_capacity_bytes()
    budget = int(vmem_cap * 0.65)                   # headroom for temporaries

    tm_sel, tk_sel = _choose_tiles(B, K_lane, N_pad, x_b, w_b, out_b,
                                   out_is_f32, sub, budget, tm_hint=tm)
    single_k = tk_sel is None

    if single_k:
        # Whole contraction in one block: no K padding needed (full-dim block).
        tk_blk, K_grid = K, 1
        x_in = x
        w_in = (weight_kn if N == N_pad else
                jnp.zeros((K, N_pad), weight_kn.dtype).at[:, :N].set(weight_kn))
    else:
        tk_blk = tk_sel
        K_pad = _round_up(K, tk_blk)
        K_grid = K_pad // tk_blk
        x_in = (x if K_pad == K else
                jnp.zeros((B, K_pad), x.dtype).at[:, :K].set(x))
        if K_pad == K and N == N_pad:
            w_in = weight_kn
        else:
            w_in = jnp.zeros((K_pad, N_pad), weight_kn.dtype).at[:K, :N].set(weight_kn)

    multi_k = K_grid > 1
    use_scratch = multi_k and not out_is_f32

    if gamma is None:
        gamma = jnp.ones((N,), jnp.float32)
    if beta is None:
        beta = jnp.zeros((N,), jnp.float32)
    # Pack bias / gamma / beta into a single lane-dense f32 operand.
    bgb = jnp.stack([bias.astype(jnp.float32),
                     gamma.astype(jnp.float32),
                     beta.astype(jnp.float32)])      # (3, N)
    if N != N_pad:
        pad = jnp.zeros((3, N_pad - N), jnp.float32).at[1, :].set(1.0)
        bgb = jnp.concatenate([bgb, pad], axis=1)    # (3, N_pad)

    grid = (pl.cdiv(B, tm_sel), K_grid)
    kernel = functools.partial(_linear_block_kernel, n_valid=N,
                               activation=activation,
                               use_tanh_gelu=use_tanh_gelu, multi_k=multi_k)

    need_bytes = _tile_vmem_bytes(tm_sel, _round_up(tk_blk, 128), N_pad,
                                  x_b, w_b, out_b, use_scratch)
    vmem_limit = int(min(max(int(need_bytes * 1.5) + (8 << 20), 32 << 20),
                         vmem_cap * 0.9))

    cost = pl.CostEstimate(
        flops=2 * B * K * N,
        transcendentals=(B * N) if activation else 0,
        bytes_accessed=(x_in.size * x_b + w_in.size * w_b + bgb.size * 4
                        + B * N_pad * out_b))

    out = pl.pallas_call(
        kernel,
        out_shape=jax.ShapeDtypeStruct((B, N_pad), out_dtype),
        grid_spec=pltpu.PrefetchScalarGridSpec(
            num_scalar_prefetch=0,
            grid=grid,
            in_specs=[
                pl.BlockSpec((tm_sel, tk_blk), lambda i, k: (i, k)),
                pl.BlockSpec((tk_blk, N_pad), lambda i, k: (k, 0)),
                pl.BlockSpec((3, N_pad), lambda i, k: (0, 0)),
            ],
            out_specs=pl.BlockSpec((tm_sel, N_pad), lambda i, k: (i, 0)),
            scratch_shapes=([pltpu.VMEM((tm_sel, N_pad), jnp.float32)]
                            if use_scratch else []),
        ),
        compiler_params=pltpu.CompilerParams(
            dimension_semantics=("parallel", "arbitrary"),
            vmem_limit_bytes=vmem_limit,
        ),
        cost_estimate=cost,
    )(x_in, w_in, bgb)

    return out if N == N_pad else out[:, :N]


def _reference(x, weight, bias, gamma, beta, activation=True):
    y = x.astype(jnp.float32) @ weight.T.astype(jnp.float32) + bias
    if not activation:
        return y.astype(x.dtype)
    mean = jnp.mean(y, axis=-1, keepdims=True)
    var = jnp.mean((y - mean) ** 2, axis=-1, keepdims=True)
    y_hat = (y - mean) / jnp.sqrt(var + LN_EPS)
    y_hat = y_hat * gamma + beta
    out = 0.5 * y_hat * (1.0 + lax.erf(y_hat / jnp.sqrt(2.0)))
    return out.astype(x.dtype)


if __name__ == "__main__":
    key = jax.random.PRNGKey(0)
    batch, input_dim, output_dim = 8, 32, 64

    kx, kw, kb = jax.random.split(key, 3)
    x = jax.random.normal(kx, (batch, input_dim), dtype=jnp.float32)

    # Deterministic parameter init (shapes per torch.nn.Linear / LayerNorm).
    bound = 1.0 / math.sqrt(input_dim)
    weight = jax.random.uniform(kw, (output_dim, input_dim),
                                minval=-bound, maxval=bound, dtype=jnp.float32)
    bias = jax.random.uniform(kb, (output_dim,),
                              minval=-bound, maxval=bound, dtype=jnp.float32)
    gamma = jnp.ones((output_dim,), dtype=jnp.float32)   # LayerNorm weight
    beta = jnp.zeros((output_dim,), dtype=jnp.float32)   # LayerNorm bias

    # activation=True path (Dropout -> Linear -> LayerNorm -> GELU)
    out = linear_block(x, weight, bias, gamma, beta, activation=True)
    out = jax.block_until_ready(out)
    ref = _reference(x, weight, bias, gamma, beta, activation=True)
    assert out.shape == (batch, output_dim)
    assert jnp.allclose(out, ref, atol=2e-4, rtol=2e-4), "mismatch (activation)"

    # activation=False path (Dropout -> Linear)
    out2 = linear_block(x, weight, bias, gamma, beta, activation=False)
    out2 = jax.block_until_ready(out2)
    ref2 = _reference(x, weight, bias, gamma, beta, activation=False)
    assert jnp.allclose(out2, ref2, atol=2e-4, rtol=2e-4), "mismatch (linear)"

    print("KERNEL_OK")
</pallas_src>

<mosaic_0001>
module attributes {stable_mosaic.version = 11 : i64} {
  func.func @_linear_block_kernel(%arg0: i32, %arg1: i32, %arg2: memref<8x32xf32, #tpu.memory_space<vmem>>, %arg3: memref<32x128xf32, #tpu.memory_space<vmem>>, %arg4: memref<3x128xf32, #tpu.memory_space<vmem>>, %arg5: memref<8x128xf32, #tpu.memory_space<vmem>>) attributes {dimension_semantics = [#tpu.dimension_semantics<parallel>, #tpu.dimension_semantics<arbitrary>], iteration_bounds = array<i64: 1, 1>, scalar_prefetch = 0 : i64, scratch_operands = 0 : i64, tpu.core_type = #tpu.core_type<tc>, window_params = [{transform_indices = @transform_0, window_bounds = array<i64: 8, 32>}, {transform_indices = @transform_1, window_bounds = array<i64: 32, 128>}, {pipeline_mode = #tpu.pipeline_mode<synchronous>, transform_indices = @transform_2, window_bounds = array<i64: 3, 128>}, {transform_indices = @transform_3, window_bounds = array<i64: 8, 128>}]} {
    %c0 = arith.constant 0 : index
    %c0_0 = arith.constant 0 : index
    %0 = vector.load %arg2[%c0, %c0_0] : memref<8x32xf32, #tpu.memory_space<vmem>>, vector<8x32xf32>
    %c0_1 = arith.constant 0 : index
    %c0_2 = arith.constant 0 : index
    %1 = vector.load %arg3[%c0_1, %c0_2] : memref<32x128xf32, #tpu.memory_space<vmem>>, vector<32x128xf32>
    %cst = arith.constant dense<0.000000e+00> : vector<8x128xf32>
    %2 = tpu.matmul %0, %1, %cst {dimension_numbers = #tpu.dot_dimension_numbers<[1], [0], [0], [1], [0, 0, 1, 1], [], []>} : vector<8x32xf32>, vector<32x128xf32>, vector<8x128xf32> -> vector<8x128xf32>
    %c0_3 = arith.constant 0 : index
    %c0_4 = arith.constant 0 : index
    %3 = vector.load %arg4[%c0_3, %c0_4] : memref<3x128xf32, #tpu.memory_space<vmem>>, vector<1x128xf32>
    %4 = vector.broadcast %3 : vector<1x128xf32> to vector<8x128xf32>
    %5 = arith.addf %2, %4 : vector<8x128xf32>
    %c1 = arith.constant 1 : index
    %c0_5 = arith.constant 0 : index
    %6 = vector.load %arg4[%c1, %c0_5] : memref<3x128xf32, #tpu.memory_space<vmem>>, vector<1x128xf32>
    %c2 = arith.constant 2 : index
    %c0_6 = arith.constant 0 : index
    %7 = vector.load %arg4[%c2, %c0_6] : memref<3x128xf32, #tpu.memory_space<vmem>>, vector<1x128xf32>
    %8 = tpu.iota {dimensions = array<i32: 1>} : vector<8x128xi32>
    %c64_i32 = arith.constant 64 : i32
    %9 = vector.broadcast %c64_i32 : i32 to vector<8x128xi32>
    %10 = arith.cmpi slt, %8, %9 : vector<8x128xi32>
    %cst_7 = arith.constant 0.000000e+00 : f32
    %11 = vector.broadcast %cst_7 : f32 to vector<8x128xf32>
    %12 = arith.select %10, %5, %11 : vector<8x128xi1>, vector<8x128xf32>
    %cst_8 = arith.constant dense<0.000000e+00> : vector<8xf32>
    %13 = vector.multi_reduction <add>, %12, %cst_8 [1] : vector<8x128xf32> to vector<8xf32>
    %14 = vector.shape_cast %13 : vector<8xf32> to vector<8x1xf32>
    %cst_9 = arith.constant 1.562500e-02 : f32
    %15 = vector.broadcast %cst_9 : f32 to vector<8x1xf32>
    %16 = arith.mulf %14, %15 : vector<8x1xf32>
    %17 = arith.mulf %12, %12 : vector<8x128xf32>
    %cst_10 = arith.constant dense<0.000000e+00> : vector<8xf32>
    %18 = vector.multi_reduction <add>, %17, %cst_10 [1] : vector<8x128xf32> to vector<8xf32>
    %19 = vector.shape_cast %18 : vector<8xf32> to vector<8x1xf32>
    %cst_11 = arith.constant 1.562500e-02 : f32
    %20 = vector.broadcast %cst_11 : f32 to vector<8x1xf32>
    %21 = arith.mulf %19, %20 : vector<8x1xf32>
    %22 = arith.mulf %16, %16 : vector<8x1xf32>
    %23 = arith.subf %21, %22 : vector<8x1xf32>
    %24 = vector.broadcast %16 : vector<8x1xf32> to vector<8x128xf32>
    %25 = arith.subf %12, %24 : vector<8x128xf32>
    %cst_12 = arith.constant 9.99999974E-6 : f32
    %26 = vector.broadcast %cst_12 : f32 to vector<8x1xf32>
    %27 = arith.addf %23, %26 : vector<8x1xf32>
    %28 = math.rsqrt %27 : vector<8x1xf32>
    %29 = vector.broadcast %28 : vector<8x1xf32> to vector<8x128xf32>
    %30 = arith.mulf %25, %29 : vector<8x128xf32>
    %31 = vector.broadcast %6 : vector<1x128xf32> to vector<8x128xf32>
    %32 = arith.mulf %30, %31 : vector<8x128xf32>
    %33 = vector.broadcast %7 : vector<1x128xf32> to vector<8x128xf32>
    %34 = arith.addf %32, %33 : vector<8x128xf32>
    %cst_13 = arith.constant 5.000000e-01 : f32
    %35 = vector.broadcast %cst_13 : f32 to vector<8x128xf32>
    %36 = arith.mulf %35, %34 : vector<8x128xf32>
    %cst_14 = arith.constant 0.707106769 : f32
    %37 = vector.broadcast %cst_14 : f32 to vector<8x128xf32>
    %38 = arith.mulf %34, %37 : vector<8x128xf32>
    %39 = math.erf %38 : vector<8x128xf32>
    %cst_15 = arith.constant 1.000000e+00 : f32
    %40 = vector.broadcast %cst_15 : f32 to vector<8x128xf32>
    %41 = arith.addf %40, %39 : vector<8x128xf32>
    %42 = arith.mulf %36, %41 : vector<8x128xf32>
    %c0_16 = arith.constant 0 : index
    %c0_17 = arith.constant 0 : index
    %43 = vector.load %arg5[%c0_16, %c0_17] : memref<8x128xf32, #tpu.memory_space<vmem>>, vector<8x128xf32>
    tpu.vector_store %arg5[%c0_16, %c0_17], %42 {strides = array<i32>} : memref<8x128xf32, #tpu.memory_space<vmem>>, vector<8x128xf32>,
    return
  }
  func.func @transform_0(%arg0: i32, %arg1: i32) -> (i32, i32) {
    %c0_i32 = arith.constant 0 : i32
    return %arg0, %arg1 : i32, i32
  }
  func.func @transform_1(%arg0: i32, %arg1: i32) -> (i32, i32) {
    %c0_i32 = arith.constant 0 : i32
    %c0_i32_0 = arith.constant 0 : i32
    return %arg1, %c0_i32 : i32, i32
  }
  func.func @transform_2(%arg0: i32, %arg1: i32) -> (i32, i32) {
    %c0_i32 = arith.constant 0 : i32
    %c0_i32_0 = arith.constant 0 : i32
    %c0_i32_1 = arith.constant 0 : i32
    return %c0_i32, %c0_i32_0 : i32, i32
  }
  func.func @transform_3(%arg0: i32, %arg1: i32) -> (i32, i32) {
    %c0_i32 = arith.constant 0 : i32
    %c0_i32_0 = arith.constant 0 : i32
    return %arg0, %c0_i32 : i32, i32
  }
}

</mosaic_0001>

<llo_original>
// kernel: tpu_custom_call.1
$region0: #{tpu_custom_call.1}
  #allocation0 [shape = 'u32[]', space=smem, size = 0x4, offset = 0x4, fixed_abs, tag = 'smem constant byte address 0x4 - core index']
  #allocation1 [shape = 'u32[144,128]{1,0:T(1,128)}', space=vmem, size = 0x12000, scoped, tag = 'internal scratch']
  %s0 = inlined_call_operand.hbm [shape: f32[8,32], index: 0, kind: input, shape index: {}]
  %s1 = inlined_call_operand.hbm [shape: f32[32,128], index: 1, kind: input, shape index: {}]
  %s2 = inlined_call_operand.vmem [shape: f32[3,128], index: 2, kind: input, shape index: {}]
  %s3 = inlined_call_operand.hbm [shape: f32[8,128], index: 3, kind: output, shape index: {}]
  %s4 = sld [smem:[#allocation0]]
  $region30: #{tpu_custom_call.1} parent=0
    _
  %s6 = ssub.s32 1, %s4
  %s7 = scalar_select 0, %s6, %s4
  $region1: #{tpu_custom_call.1} parent=0
    #allocation2 [shape = 'u8[4096]{0}', space=vmem, size = 0x1000, scoped, tag = 'input window, operand 0, single buffered']
    #allocation3 [shape = 's32[1]{0}', space=sflag, size = 0x4, scoped, tag = 'scoped memory for tpu_custom_call.1']
    #allocation4 [shape = 's32[1]{0}', space=sflag, size = 0x4, scoped, tag = 'scoped memory for tpu_custom_call.1']
    #allocation5 [shape = 'u8[16384]{0}', space=vmem, size = 0x4000, scoped, tag = 'input window, operand 1, single buffered']
    #allocation6 [shape = 's32[1]{0}', space=sflag, size = 0x4, scoped, tag = 'scoped memory for tpu_custom_call.1']
    #allocation7 [shape = 'u8[4096]{0}', space=vmem, size = 0x1000, scoped, tag = 'output window, operand 0, single buffered']
    %8 = vsyncpa [#allocation3], 0
    %9 = vsyncpa [#allocation6], 0
    %10 = vsyncpa [#allocation4], 0
    // Predicated region
    $region2: #{tpu_custom_call.1} parent=1 // pred_check
      _
    $region3: #{tpu_custom_call.1} parent=1 // pred_check_branch
      %12 = sbr.rel (0) target = $region5
    $region4: #{tpu_custom_call.1} parent=1 // pred_region
      %s14 = ssub.s32 128, 128
      %15 = vsyncadd [#allocation3], %s14
      %s17 = sshll.u32 [#allocation2], 4
      %s18 = int_to_ptr.vmem [resolvable:$true] %s17
      %20 = dma.hbm_to_vmem [thread:$0]  %s0, 128, %s18, [#allocation3]
    $region5: #{tpu_custom_call.1} parent=1 // pred_fallthru
      _
    // Predicated region
    $region6: #{tpu_custom_call.1} parent=1 // pred_check
      _
    $region7: #{tpu_custom_call.1} parent=1 // pred_check_branch
      %22 = sbr.rel (0) target = $region9
    $region8: #{tpu_custom_call.1} parent=1 // pred_region
      %s24 = ssub.s32 512, 512
      %25 = vsyncadd [#allocation6], %s24
      %s26 = sshll.u32 [#allocation5], 4
      %s27 = int_to_ptr.vmem [resolvable:$true] %s26
      %32 = dma.hbm_to_vmem [thread:$0]  %s1, 512, %s27, [#allocation6], 128, 128, 8
    $region9: #{tpu_custom_call.1} parent=1 // pred_fallthru
      _
    // Predicated region
    $region10: #{tpu_custom_call.1} parent=1 // pred_check
      _
    $region11: #{tpu_custom_call.1} parent=1 // pred_check_branch
      %34 = sbr.rel (0) target = $region13
    $region12: #{tpu_custom_call.1} parent=1 // pred_region
      _
    $region13: #{tpu_custom_call.1} parent=1 // pred_fallthru
      _
    // Predicated region
    $region14: #{tpu_custom_call.1} parent=1 // pred_check
      _
    $region15: #{tpu_custom_call.1} parent=1 // pred_check_branch
      %36 = sbr.rel (0) target = $region17
    $region16: #{tpu_custom_call.1} parent=1 // pred_region
      %37 = dma.done [#allocation3], 128
    $region17: #{tpu_custom_call.1} parent=1 // pred_fallthru
      _
    // Predicated region
    $region18: #{tpu_custom_call.1} parent=1 // pred_check
      _
    $region19: #{tpu_custom_call.1} parent=1 // pred_check_branch
      %39 = sbr.rel (0) target = $region21
    $region20: #{tpu_custom_call.1} parent=1 // pred_region
      %40 = dma.done [#allocation6], 512
    $region21: #{tpu_custom_call.1} parent=1 // pred_fallthru
      _
    %v41 = vld [vmem:[#allocation2] sm:$0xff]
    %v42 = vld [vmem:[#allocation5] sm:$0xff]
    %v43 = vld [vmem:[#allocation5 + $0x8] sm:$0xff]
    %v44 = vld [vmem:[#allocation5 + $0x10] sm:$0xff]
    %v45 = vld [vmem:[#allocation5 + $0x18] sm:$0xff]
    %v46 = vld [vmem:[%s2] sm:$0x1]
    %v47 = vlaneseq
    %v48 = vshrl.u32 %v47, 7
    %v49 = vsub.s32 0, %v48
    %v50 = vrot.slane %v46, %v49
    %vm51 = vcmask 261120
    %v53 = vsel %vm51, %v41, 0
    %55 = vmatprep.subr.mxu0 0.0
    %56 = vmatpush1.msra.mxu0 %v42
    %57 = vmatprep.subr.mxu0 0.0
    %58 = vmatpush1.msra.mxu0 %v43
    %59 = vmatprep.subr.mxu0 0.0
    %60 = vmatpush1.msra.mxu0 %v44
    %61 = vmatprep.subr.mxu0 0.0
    %62 = vmatpush1.msra.mxu0 %v45
    %63 = vmatprep.subr.mxu0 0.0
    %64 = vmatpush1.msra.mxu0 0.0
    %65 = vmatprep.subr.mxu0 0.0
    %66 = vmatpush1.msra.mxu0 0.0
    %67 = vmatprep.subr.mxu0 0.0
    %68 = vmatpush1.msra.mxu0 0.0
    %69 = vmatprep.subr.mxu0 0.0
    %70 = vmatpush1.msra.mxu0 0.0
    %71 = vmatprep.subr.mxu0 0.0
    %72 = vmatpush1.msra.mxu0 0.0
    %73 = vmatprep.subr.mxu0 0.0
    %74 = vmatpush1.msra.mxu0 0.0
    %75 = vmatprep.subr.mxu0 0.0
    %76 = vmatpush1.msra.mxu0 0.0
    %77 = vmatprep.subr.mxu0 0.0
    %78 = vmatpush1.msra.mxu0 0.0
    %79 = vmatprep.subr.mxu0 0.0
    %80 = vmatpush1.msra.mxu0 0.0
    %81 = vmatprep.subr.mxu0 0.0
    %82 = vmatpush1.msra.mxu0 0.0
    %83 = vmatprep.subr.mxu0 0.0
    %84 = vmatpush1.msra.mxu0 0.0
    %85 = vmatprep.subr.mxu0 0.0
    %86 = vmatpush1.msra.mxu0 0.0
    %87 = vmatprep.subr.mxu0 0.0
    %88 = vmatpush1.msra.mxu0 0.0
    %89 = vmatprep.subr.mxu0 0.0
    %90 = vmatpush1.msra.mxu0 0.0
    %91 = vmatprep.subr.mxu0 0.0
    %92 = vmatpush1.msra.mxu0 0.0
    %93 = vmatprep.subr.mxu0 0.0
    %94 = vmatpush1.msra.mxu0 0.0
    %95 = vmatprep.subr.mxu0 0.0
    %96 = vmatpush1.msra.mxu0 0.0
    %97 = vmatprep.subr.mxu0 0.0
    %98 = vmatpush1.msra.mxu0 0.0
    %99 = vmatprep.subr.mxu0 0.0
    %100 = vmatpush1.msra.mxu0 0.0
    %101 = vmatprep.subr.mxu0 0.0
    %102 = vmatpush1.msra.mxu0 0.0
    %103 = vmatprep.subr.mxu0 0.0
    %104 = vmatpush1.msra.mxu0 0.0
    %105 = vmatprep.subr.mxu0 0.0
    %106 = vmatpush1.msra.mxu0 0.0
    %107 = vmatprep.subr.mxu0 0.0
    %108 = vmatpush1.msra.mxu0 0.0
    %109 = vmatprep.subr.mxu0 0.0
    %110 = vmatpush1.msra.mxu0 0.0
    %111 = vmatprep.subr.mxu0 0.0
    %112 = vmatpush1.msra.mxu0 0.0
    %113 = vmatprep.subr.mxu0 0.0
    %114 = vmatpush1.msra.mxu0 0.0
    %115 = vmatprep.subr.mxu0 0.0
    %116 = vmatpush1.msra.mxu0 0.0
    %117 = vmatprep.subr.mxu0 0.0
    %118 = vmatpush1.msra.mxu0 0.0
    %119 = vmatprep.mubr.f32.mxu0 0.0
    %120 = vmatmul.mubr.f32.gmra.mrb[0].mxu0 %v53
    %v121 = vpop.f32.mrb[0].mxu0
    %v122 = vadd.f32 %v50, %v121
    %v123 = vpop.f32.mrb[0].mxu0
    %124 = vdwg.mxu0
    %v125 = vld [vmem:[%s2 + $0x1] sm:$0x1]
    %v126 = vld [vmem:[%s2 + $0x2] sm:$0x1]
    %v127 = vlaneseq
    %v128 = vand.u32 %v127, 127
    %vm129 = vcmp.lt.s32.totalorder %v128, 64
    %v130 = vsel %vm129, %v122, 0.0
    %131 = vadd.xlane.f32.xlu0 %v130
    %v132 = vpop.xlane.xlu0 %131
    %v133 = vmul.f32 %v132, 0.015625
    %v134 = vmul.f32 %v130, %v130
    %135 = vadd.xlane.f32.xlu0 %v134
    %v136 = vpop.xlane.xlu0 %135
    %v137 = vmul.f32 %v136, 0.015625
    %v138 = vmul.f32 %v133, %v133
    %v139 = vsub.f32 %v137, %v138
    %v140 = vsub.f32 %v130, %v133
    %v141 = vadd.f32 %v139, 1e-05
    %v142 = vrsqrt.pop %v141
    %v143 = vmul.f32 %v140, %v142
    %v144 = vlaneseq
    %v145 = vshrl.u32 %v144, 7
    %v146 = vsub.s32 0, %v145
    %v147 = vrot.slane %v125, %v146
    %v148 = vmul.f32 %v143, %v147
    %v149 = vlaneseq
    %v150 = vshrl.u32 %v149, 7
    %v151 = vsub.s32 0, %v150
    %v152 = vrot.slane %v126, %v151
    %v153 = vadd.f32 %v148, %v152
    %v154 = vmul.f32 %v153, 0.5
    %v155 = vmul.f32 %v153, 0.70710677
    %v156 = verf.f32.pop %v155
    %v157 = vadd.f32 %v156, 1.0
    %v158 = vmul.f32 %v154, %v157
    %159 = vst [vmem:[#allocation7] sm:$0xff] %v158
    // Predicated region
    $region22: #{tpu_custom_call.1} parent=1 // pred_check
      _
    $region23: #{tpu_custom_call.1} parent=1 // pred_check_branch
      %161 = sbr.rel (0) target = $region25
    $region24: #{tpu_custom_call.1} parent=1 // pred_region
      %s163 = ssub.s32 128, 128
      %164 = vsyncadd [#allocation4], %s163
      %s166 = sshll.u32 [#allocation7], 4
      %s167 = int_to_ptr.vmem [resolvable:$true] %s166
      %169 = dma.vmem_to_hbm [thread:$0]  %s167, 128, %s3, [#allocation4]
    $region25: #{tpu_custom_call.1} parent=1 // pred_fallthru
      _
    // Predicated region
    $region26: #{tpu_custom_call.1} parent=1 // pred_check
      _
    $region27: #{tpu_custom_call.1} parent=1 // pred_check_branch
      %171 = sbr.rel (0) target = $region29
    $region28: #{tpu_custom_call.1} parent=1 // pred_region
      %172 = dma.done [#allocation4], 128
    $region29: #{tpu_custom_call.1} parent=1 // pred_fallthru
      _
    %173 = vsyncpa [#allocation3], 1
    %174 = vsyncpa [#allocation6], 1
    %175 = vsyncpa [#allocation4], 1

</llo_original>
